<compile_context>
chip_gen: v7x
topology: tpu7x:2x2x1
jax: 0.10.0
libtpu: 0.0.40
codegen_flags: <defaults>
</compile_context>

<pallas_src>
import math

import jax
import jax.numpy as jnp
from jax.experimental import pallas as pl
from jax.experimental.pallas import tpu as pltpu


def _round_up(n, m):
    return ((n + m - 1) // m) * m


def ffnn_kernel(x_ref, w1_ref, w2_ref, w3_ref, o_ref):
    # One batch tile: three MXU matmuls with f32 accumulation, VPU ReLUs on the
    # f32 accumulator, operands narrowed to bf16 between layers.
    h1 = jnp.dot(x_ref[...], w1_ref[...], preferred_element_type=jnp.float32)
    h1 = jnp.maximum(h1, 0.0).astype(jnp.bfloat16)   # ReLU
    # TODO(synk): nn.Dropout in train mode not implemented; eval-mode identity.
    h2 = jnp.dot(h1, w2_ref[...], preferred_element_type=jnp.float32)
    h2 = jnp.maximum(h2, 0.0).astype(jnp.bfloat16)   # ReLU
    o_ref[...] = jnp.dot(h2, w3_ref[...], preferred_element_type=jnp.float32)


def custom_ffnn_forward(x, w1, w2, w3, *, tile_b=256):
    """x: (B, ...) -> logits (B, 19). Reshape/cast/pad is one-time wrapper glue."""
    b = x.shape[0]
    feat = x.reshape(b, -1)
    in_f = feat.shape[1]
    h1_dim, h2_dim, out_dim = w1.shape[1], w2.shape[1], w3.shape[1]

    # Lane-pad hidden/output dims to multiples of 128 (zero padding -> exact math).
    H1 = _round_up(h1_dim, 128)
    H2 = _round_up(h2_dim, 128)
    OUT = _round_up(out_dim, 128)

    bf16 = jnp.bfloat16
    w1p = jnp.zeros((in_f, H1), bf16).at[:, :h1_dim].set(w1.astype(bf16))
    w2p = jnp.zeros((H1, H2), bf16).at[:h1_dim, :h2_dim].set(w2.astype(bf16))
    w3p = jnp.zeros((H2, OUT), bf16).at[:h2_dim, :out_dim].set(w3.astype(bf16))

    # Batch tiling: cap tile at tile_b, keep it a sublane multiple, pad batch.
    tb = min(tile_b, _round_up(b, 8))
    grid_b = pl.cdiv(b, tb)
    b_pad = grid_b * tb
    feat_b = feat.astype(bf16)                      # single cast, fused with pad below
    if b_pad != b:
        feat_b = jnp.zeros((b_pad, in_f), bf16).at[:b].set(feat_b)

    flops = 2 * b_pad * (in_f * H1 + H1 * H2 + H2 * OUT)
    bytes_accessed = 2 * (feat_b.size + w1p.size + w2p.size + w3p.size) + 4 * b_pad * OUT

    out = pl.pallas_call(
        ffnn_kernel,
        out_shape=jax.ShapeDtypeStruct((b_pad, OUT), jnp.float32),
        grid_spec=pltpu.PrefetchScalarGridSpec(
            num_scalar_prefetch=0,
            grid=(grid_b,),
            in_specs=[
                pl.BlockSpec((tb, in_f), lambda i: (i, 0)),   # x tile, double-buffered
                pl.BlockSpec((in_f, H1), lambda i: (0, 0)),   # weights: resident,
                pl.BlockSpec((H1, H2), lambda i: (0, 0)),     #   constant block index
                pl.BlockSpec((H2, OUT), lambda i: (0, 0)),    #   -> fetched once
            ],
            out_specs=pl.BlockSpec((tb, OUT), lambda i: (i, 0)),
        ),
        compiler_params=pltpu.CompilerParams(dimension_semantics=("parallel",)),
        cost_estimate=pl.CostEstimate(flops=flops, transcendentals=0,
                                      bytes_accessed=bytes_accessed),
    )(feat_b, w1p, w2p, w3p)
    return out[:b, :out_dim]


def kaiming_uniform(key, shape, a=math.sqrt(5)):
    # Matches nn.init.kaiming_uniform_(tensor, a=sqrt(5)) on these raw (in, out)
    # parameters: PyTorch's fan_in for a 2-D tensor is tensor.size(1), i.e. the
    # OUT dim here (1000 / 100 / 19), not nn.Linear's in_features convention.
    fan_in = shape[1]
    gain = math.sqrt(2.0 / (1.0 + a * a))
    bound = math.sqrt(3.0) * gain / math.sqrt(fan_in)
    return jax.random.uniform(key, shape, jnp.float32, minval=-bound, maxval=bound)


if __name__ == "__main__":
    vocab_size = 8
    batch = 2
    in_features = vocab_size * 20   # 160

    key = jax.random.PRNGKey(0)
    kx, k1, k2, k3 = jax.random.split(key, 4)

    # Input shaped (B, vocab_size, 20); forward flattens it to (B, vocab_size*20).
    x = jax.random.normal(kx, (batch, vocab_size, 20), jnp.float32)
    w1 = kaiming_uniform(k1, (in_features, 1000))
    w2 = kaiming_uniform(k2, (1000, 100))
    w3 = kaiming_uniform(k3, (100, 19))

    logits = custom_ffnn_forward(x, w1, w2, w3)
    jax.block_until_ready(logits)
    assert logits.shape == (batch, 19)

    # Reference 1: same bf16-operand / f32-accumulate arithmetic as the kernel.
    feat = x.reshape(batch, -1)
    fb = feat.astype(jnp.bfloat16)
    h1 = jnp.maximum(jnp.dot(fb, w1.astype(jnp.bfloat16),
                             preferred_element_type=jnp.float32), 0.0)
    h2 = jnp.maximum(jnp.dot(h1.astype(jnp.bfloat16), w2.astype(jnp.bfloat16),
                             preferred_element_type=jnp.float32), 0.0)
    ref_bf16 = jnp.dot(h2.astype(jnp.bfloat16), w3.astype(jnp.bfloat16),
                       preferred_element_type=jnp.float32)
    assert jnp.allclose(logits, ref_bf16, atol=5e-3, rtol=1e-2)

    # Reference 2: pure f32 module semantics (looser tolerance due to bf16 operands).
    r = jnp.maximum(feat @ w1, 0.0)
    r = jnp.maximum(r @ w2, 0.0)
    ref_f32 = r @ w3
    assert jnp.allclose(logits, ref_f32, atol=5e-2, rtol=5e-2)

    print("KERNEL_OK")
</pallas_src>

<mosaic_0001>
module attributes {stable_mosaic.version = 11 : i64} {
  func.func @ffnn_kernel(%arg0: i32, %arg1: memref<8x160xbf16, #tpu.memory_space<vmem>>, %arg2: memref<160x1024xbf16, #tpu.memory_space<vmem>>, %arg3: memref<1024x128xbf16, #tpu.memory_space<vmem>>, %arg4: memref<128x128xbf16, #tpu.memory_space<vmem>>, %arg5: memref<8x128xf32, #tpu.memory_space<vmem>>) attributes {dimension_semantics = [#tpu.dimension_semantics<parallel>], iteration_bounds = array<i64: 1>, scalar_prefetch = 0 : i64, scratch_operands = 0 : i64, tpu.core_type = #tpu.core_type<tc>, window_params = [{transform_indices = @transform_0, window_bounds = array<i64: 8, 160>}, {pipeline_mode = #tpu.pipeline_mode<synchronous>, transform_indices = @transform_1, window_bounds = array<i64: 160, 1024>}, {pipeline_mode = #tpu.pipeline_mode<synchronous>, transform_indices = @transform_2, window_bounds = array<i64: 1024, 128>}, {pipeline_mode = #tpu.pipeline_mode<synchronous>, transform_indices = @transform_3, window_bounds = array<i64: 128, 128>}, {transform_indices = @transform_4, window_bounds = array<i64: 8, 128>}]} {
    %c0 = arith.constant 0 : index
    %c0_0 = arith.constant 0 : index
    %0 = vector.load %arg1[%c0, %c0_0] : memref<8x160xbf16, #tpu.memory_space<vmem>>, vector<8x160xbf16>
    %c0_1 = arith.constant 0 : index
    %c0_2 = arith.constant 0 : index
    %1 = vector.load %arg2[%c0_1, %c0_2] : memref<160x1024xbf16, #tpu.memory_space<vmem>>, vector<160x1024xbf16>
    %cst = arith.constant dense<0.000000e+00> : vector<8x1024xf32>
    %2 = tpu.matmul %0, %1, %cst {dimension_numbers = #tpu.dot_dimension_numbers<[1], [0], [0], [1], [0, 0, 1, 1], [], []>} : vector<8x160xbf16>, vector<160x1024xbf16>, vector<8x1024xf32> -> vector<8x1024xf32>
    %cst_3 = arith.constant 0.000000e+00 : f32
    %3 = vector.broadcast %cst_3 : f32 to vector<8x1024xf32>
    %4 = arith.maximumf %2, %3 : vector<8x1024xf32>
    %5 = arith.truncf %4 : vector<8x1024xf32> to vector<8x1024xbf16>
    %c0_4 = arith.constant 0 : index
    %c0_5 = arith.constant 0 : index
    %6 = vector.load %arg3[%c0_4, %c0_5] : memref<1024x128xbf16, #tpu.memory_space<vmem>>, vector<1024x128xbf16>
    %cst_6 = arith.constant dense<0.000000e+00> : vector<8x128xf32>
    %7 = tpu.matmul %5, %6, %cst_6 {dimension_numbers = #tpu.dot_dimension_numbers<[1], [0], [0], [1], [0, 0, 1, 1], [], []>} : vector<8x1024xbf16>, vector<1024x128xbf16>, vector<8x128xf32> -> vector<8x128xf32>
    %cst_7 = arith.constant 0.000000e+00 : f32
    %8 = vector.broadcast %cst_7 : f32 to vector<8x128xf32>
    %9 = arith.maximumf %7, %8 : vector<8x128xf32>
    %10 = arith.truncf %9 : vector<8x128xf32> to vector<8x128xbf16>
    %c0_8 = arith.constant 0 : index
    %c0_9 = arith.constant 0 : index
    %11 = vector.load %arg4[%c0_8, %c0_9] : memref<128x128xbf16, #tpu.memory_space<vmem>>, vector<128x128xbf16>
    %cst_10 = arith.constant dense<0.000000e+00> : vector<8x128xf32>
    %12 = tpu.matmul %10, %11, %cst_10 {dimension_numbers = #tpu.dot_dimension_numbers<[1], [0], [0], [1], [0, 0, 1, 1], [], []>} : vector<8x128xbf16>, vector<128x128xbf16>, vector<8x128xf32> -> vector<8x128xf32>
    %c0_11 = arith.constant 0 : index
    %c0_12 = arith.constant 0 : index
    %13 = vector.load %arg5[%c0_11, %c0_12] : memref<8x128xf32, #tpu.memory_space<vmem>>, vector<8x128xf32>
    tpu.vector_store %arg5[%c0_11, %c0_12], %12 {strides = array<i32>} : memref<8x128xf32, #tpu.memory_space<vmem>>, vector<8x128xf32>,
    return
  }
  func.func @transform_0(%arg0: i32) -> (i32, i32) {
    %c0_i32 = arith.constant 0 : i32
    %c0_i32_0 = arith.constant 0 : i32
    return %arg0, %c0_i32 : i32, i32
  }
  func.func @transform_1(%arg0: i32) -> (i32, i32) {
    %c0_i32 = arith.constant 0 : i32
    %c0_i32_0 = arith.constant 0 : i32
    %c0_i32_1 = arith.constant 0 : i32
    return %c0_i32, %c0_i32_0 : i32, i32
  }
  func.func @transform_2(%arg0: i32) -> (i32, i32) {
    %c0_i32 = arith.constant 0 : i32
    %c0_i32_0 = arith.constant 0 : i32
    %c0_i32_1 = arith.constant 0 : i32
    return %c0_i32, %c0_i32_0 : i32, i32
  }
  func.func @transform_3(%arg0: i32) -> (i32, i32) {
    %c0_i32 = arith.constant 0 : i32
    %c0_i32_0 = arith.constant 0 : i32
    %c0_i32_1 = arith.constant 0 : i32
    return %c0_i32, %c0_i32_0 : i32, i32
  }
  func.func @transform_4(%arg0: i32) -> (i32, i32) {
    %c0_i32 = arith.constant 0 : i32
    %c0_i32_0 = arith.constant 0 : i32
    return %arg0, %c0_i32 : i32, i32
  }
}

</mosaic_0001>

<llo_original>
// kernel: tpu_custom_call.1
$region0: #{tpu_custom_call.1}
  #allocation0 [shape = 'u32[]', space=smem, size = 0x4, offset = 0x4, fixed_abs, tag = 'smem constant byte address 0x4 - core index']
  #allocation1 [shape = 'u32[144,128]{1,0:T(1,128)}', space=vmem, size = 0x12000, scoped, tag = 'internal scratch']
  %s0 = inlined_call_operand.hbm [shape: bf16[8,160], index: 0, kind: input, shape index: {}]
  %s1 = inlined_call_operand.hbm [shape: bf16[160,1024], index: 1, kind: input, shape index: {}]
  %s2 = inlined_call_operand.hbm [shape: bf16[1024,128], index: 2, kind: input, shape index: {}]
  %s3 = inlined_call_operand.hbm [shape: bf16[128,128], index: 3, kind: input, shape index: {}]
  %s4 = inlined_call_operand.hbm [shape: f32[8,128], index: 4, kind: output, shape index: {}]
  %s5 = sld [smem:[#allocation0]]
  $region42: #{tpu_custom_call.1} parent=0
    _
  %s7 = ssub.s32 1, %s5
  %s8 = scalar_select 0, %s7, %s5
  $region1: #{tpu_custom_call.1} parent=0
    #allocation2 [shape = 'u8[4096]{0}', space=vmem, size = 0x1000, scoped, tag = 'input window, operand 0, single buffered']
    #allocation3 [shape = 's32[1]{0}', space=sflag, size = 0x4, scoped, tag = 'scoped memory for tpu_custom_call.1']
    #allocation4 [shape = 's32[1]{0}', space=sflag, size = 0x4, scoped, tag = 'scoped memory for tpu_custom_call.1']
    #allocation5 [shape = 'u8[327680]{0}', space=vmem, size = 0x50000, scoped, tag = 'input window, operand 1, single buffered']
    #allocation6 [shape = 's32[1]{0}', space=sflag, size = 0x4, scoped, tag = 'scoped memory for tpu_custom_call.1']
    #allocation7 [shape = 'u8[262144]{0}', space=vmem, size = 0x40000, scoped, tag = 'input window, operand 2, single buffered']
    #allocation8 [shape = 'u8[32768]{0}', space=vmem, size = 0x8000, scoped, tag = 'input window, operand 3, single buffered']
    #allocation9 [shape = 's32[1]{0}', space=sflag, size = 0x4, scoped, tag = 'scoped memory for tpu_custom_call.1']
    #allocation10 [shape = 'u8[4096]{0}', space=vmem, size = 0x1000, scoped, tag = 'output window, operand 0, single buffered']
    %9 = vsyncpa [#allocation3], 0
    %10 = vsyncpa [#allocation6], 0
    %11 = vsyncpa [#allocation9], 0
    %12 = vsyncpa [#allocation4], 0
    // Predicated region
    $region2: #{tpu_custom_call.1} parent=1 // pred_check
      _
    $region3: #{tpu_custom_call.1} parent=1 // pred_check_branch
      %14 = sbr.rel (0) target = $region5
    $region4: #{tpu_custom_call.1} parent=1 // pred_region
      %s16 = ssub.s32 128, 128
      %17 = vsyncadd [#allocation3], %s16
      %s19 = sshll.u32 [#allocation2], 4
      %s20 = int_to_ptr.vmem [resolvable:$true] %s19
      %22 = dma.hbm_to_vmem [thread:$0]  %s0, 128, %s20, [#allocation3]
    $region5: #{tpu_custom_call.1} parent=1 // pred_fallthru
      _
    // Predicated region
    $region6: #{tpu_custom_call.1} parent=1 // pred_check
      _
    $region7: #{tpu_custom_call.1} parent=1 // pred_check_branch
      %24 = sbr.rel (0) target = $region9
    $region8: #{tpu_custom_call.1} parent=1 // pred_region
      %s26 = ssub.s32 10240, 10240
      %27 = vsyncadd [#allocation6], %s26
      %s28 = sshll.u32 [#allocation5], 4
      %s29 = int_to_ptr.vmem [resolvable:$true] %s28
      %34 = dma.hbm_to_vmem [thread:$0]  %s1, 10240, %s29, [#allocation6], 512, 512, 32
    $region9: #{tpu_custom_call.1} parent=1 // pred_fallthru
      _
    // Predicated region
    $region10: #{tpu_custom_call.1} parent=1 // pred_check
      _
    $region11: #{tpu_custom_call.1} parent=1 // pred_check_branch
      %36 = sbr.rel (0) target = $region13
    $region12: #{tpu_custom_call.1} parent=1 // pred_region
      %s38 = ssub.s32 8192, 8192
      %39 = vsyncadd [#allocation6], %s38
      %s40 = sshll.u32 [#allocation7], 4
      %s41 = int_to_ptr.vmem [resolvable:$true] %s40
      %46 = dma.hbm_to_vmem [thread:$0]  %s2, 8192, %s41, [#allocation6], 64, 64, 4
    $region13: #{tpu_custom_call.1} parent=1 // pred_fallthru
      _
    // Predicated region
    $region14: #{tpu_custom_call.1} parent=1 // pred_check
      _
    $region15: #{tpu_custom_call.1} parent=1 // pred_check_branch
      %48 = sbr.rel (0) target = $region17
    $region16: #{tpu_custom_call.1} parent=1 // pred_region
      %s50 = ssub.s32 1024, 1024
      %51 = vsyncadd [#allocation9], %s50
      %s52 = sshll.u32 [#allocation8], 4
      %s53 = int_to_ptr.vmem [resolvable:$true] %s52
      %58 = dma.hbm_to_vmem [thread:$0]  %s3, 1024, %s53, [#allocation9], 64, 64, 4
    $region17: #{tpu_custom_call.1} parent=1 // pred_fallthru
      _
    // Predicated region
    $region18: #{tpu_custom_call.1} parent=1 // pred_check
      _
    $region19: #{tpu_custom_call.1} parent=1 // pred_check_branch
      %60 = sbr.rel (0) target = $region21
    $region20: #{tpu_custom_call.1} parent=1 // pred_region
      %61 = dma.done [#allocation3], 128
    $region21: #{tpu_custom_call.1} parent=1 // pred_fallthru
      _
    // Predicated region
    $region22: #{tpu_custom_call.1} parent=1 // pred_check
      _
    $region23: #{tpu_custom_call.1} parent=1 // pred_check_branch
      %63 = sbr.rel (0) target = $region25
    $region24: #{tpu_custom_call.1} parent=1 // pred_region
      %64 = dma.done [#allocation6], 10240
    $region25: #{tpu_custom_call.1} parent=1 // pred_fallthru
      _
    // Predicated region
    $region26: #{tpu_custom_call.1} parent=1 // pred_check
      _
    $region27: #{tpu_custom_call.1} parent=1 // pred_check_branch
      %66 = sbr.rel (0) target = $region29
    $region28: #{tpu_custom_call.1} parent=1 // pred_region
      %67 = dma.done [#allocation6], 8192
    $region29: #{tpu_custom_call.1} parent=1 // pred_fallthru
      _
    // Predicated region
    $region30: #{tpu_custom_call.1} parent=1 // pred_check
      _
    $region31: #{tpu_custom_call.1} parent=1 // pred_check_branch
      %69 = sbr.rel (0) target = $region33
    $region32: #{tpu_custom_call.1} parent=1 // pred_region
      %70 = dma.done [#allocation9], 1024
    $region33: #{tpu_custom_call.1} parent=1 // pred_fallthru
      _
    %v72 = vld [vmem:[#allocation2] sm:$0xff]
    %v73 = vld [vmem:[#allocation5] sm:$0xff]
    %v74 = vld [vmem:[#allocation5 + $0x8] sm:$0xff]
    %v75 = vld [vmem:[#allocation5 + $0x10] sm:$0xff]
    %v76 = vld [vmem:[#allocation5 + $0x18] sm:$0xff]
    %v77 = vld [vmem:[#allocation5 + $0x20] sm:$0xff]
    %v78 = vld [vmem:[#allocation5 + $0x28] sm:$0xff]
    %v79 = vld [vmem:[#allocation5 + $0x30] sm:$0xff]
    %v80 = vld [vmem:[#allocation5 + $0x38] sm:$0xff]
    %v81 = vld [vmem:[#allocation5 + $0x40] sm:$0xff]
    %v82 = vld [vmem:[#allocation5 + $0x48] sm:$0xff]
    %v83 = vld [vmem:[#allocation5 + $0x50] sm:$0xff]
    %v84 = vld [vmem:[#allocation5 + $0x58] sm:$0xff]
    %v85 = vld [vmem:[#allocation5 + $0x60] sm:$0xff]
    %v86 = vld [vmem:[#allocation5 + $0x68] sm:$0xff]
    %v87 = vld [vmem:[#allocation5 + $0x70] sm:$0xff]
    %v88 = vld [vmem:[#allocation5 + $0x78] sm:$0xff]
    %v89 = vld [vmem:[#allocation5 + $0x80] sm:$0xff]
    %v90 = vld [vmem:[#allocation5 + $0x88] sm:$0xff]
    %v91 = vld [vmem:[#allocation5 + $0x90] sm:$0xff]
    %v92 = vld [vmem:[#allocation5 + $0x98] sm:$0xff]
    %v93 = vld [vmem:[#allocation5 + $0xa0] sm:$0xff]
    %v94 = vld [vmem:[#allocation5 + $0xa8] sm:$0xff]
    %v95 = vld [vmem:[#allocation5 + $0xb0] sm:$0xff]
    %v96 = vld [vmem:[#allocation5 + $0xb8] sm:$0xff]
    %v97 = vld [vmem:[#allocation5 + $0xc0] sm:$0xff]
    %v98 = vld [vmem:[#allocation5 + $0xc8] sm:$0xff]
    %v99 = vld [vmem:[#allocation5 + $0xd0] sm:$0xff]
    %v100 = vld [vmem:[#allocation5 + $0xd8] sm:$0xff]
    %v101 = vld [vmem:[#allocation5 + $0xe0] sm:$0xff]
    %v102 = vld [vmem:[#allocation5 + $0xe8] sm:$0xff]
    %v103 = vld [vmem:[#allocation5 + $0xf0] sm:$0xff]
    %v104 = vld [vmem:[#allocation5 + $0xf8] sm:$0xff]
    %v105 = vld [vmem:[#allocation5 + $0x100] sm:$0xff]
    %v106 = vld [vmem:[#allocation5 + $0x108] sm:$0xff]
    %v107 = vld [vmem:[#allocation5 + $0x110] sm:$0xff]
    %v108 = vld [vmem:[#allocation5 + $0x118] sm:$0xff]
    %v109 = vld [vmem:[#allocation5 + $0x120] sm:$0xff]
    %v110 = vld [vmem:[#allocation5 + $0x128] sm:$0xff]
    %v111 = vld [vmem:[#allocation5 + $0x130] sm:$0xff]
    %v112 = vld [vmem:[#allocation5 + $0x138] sm:$0xff]
    %v113 = vld [vmem:[#allocation5 + $0x140] sm:$0xff]
    %v114 = vld [vmem:[#allocation5 + $0x148] sm:$0xff]
    %v115 = vld [vmem:[#allocation5 + $0x150] sm:$0xff]
    %v116 = vld [vmem:[#allocation5 + $0x158] sm:$0xff]
    %v117 = vld [vmem:[#allocation5 + $0x160] sm:$0xff]
    %v118 = vld [vmem:[#allocation5 + $0x168] sm:$0xff]
    %v119 = vld [vmem:[#allocation5 + $0x170] sm:$0xff]
    %v120 = vld [vmem:[#allocation5 + $0x178] sm:$0xff]
    %v121 = vld [vmem:[#allocation5 + $0x180] sm:$0xff]
    %v122 = vld [vmem:[#allocation5 + $0x188] sm:$0xff]
    %v123 = vld [vmem:[#allocation5 + $0x190] sm:$0xff]
    %v124 = vld [vmem:[#allocation5 + $0x198] sm:$0xff]
    %v125 = vld [vmem:[#allocation5 + $0x1a0] sm:$0xff]
    %v126 = vld [vmem:[#allocation5 + $0x1a8] sm:$0xff]
    %v127 = vld [vmem:[#allocation5 + $0x1b0] sm:$0xff]
    %v128 = vld [vmem:[#allocation5 + $0x1b8] sm:$0xff]
    %v129 = vld [vmem:[#allocation5 + $0x1c0] sm:$0xff]
    %v130 = vld [vmem:[#allocation5 + $0x1c8] sm:$0xff]
    %v131 = vld [vmem:[#allocation5 + $0x1d0] sm:$0xff]
    %v132 = vld [vmem:[#allocation5 + $0x1d8] sm:$0xff]
    %v133 = vld [vmem:[#allocation5 + $0x1e0] sm:$0xff]
    %v134 = vld [vmem:[#allocation5 + $0x1e8] sm:$0xff]
    %v135 = vld [vmem:[#allocation5 + $0x1f0] sm:$0xff]
    %v136 = vld [vmem:[#allocation5 + $0x1f8] sm:$0xff]
    %v137 = vld [vmem:[#allocation5 + $0x200] sm:$0xff]
    %v138 = vld [vmem:[#allocation5 + $0x208] sm:$0xff]
    %v139 = vld [vmem:[#allocation5 + $0x210] sm:$0xff]
    %v140 = vld [vmem:[#allocation5 + $0x218] sm:$0xff]
    %v141 = vld [vmem:[#allocation5 + $0x220] sm:$0xff]
    %v142 = vld [vmem:[#allocation5 + $0x228] sm:$0xff]
    %v143 = vld [vmem:[#allocation5 + $0x230] sm:$0xff]
    %v144 = vld [vmem:[#allocation5 + $0x238] sm:$0xff]
    %v145 = vld [vmem:[#allocation5 + $0x240] sm:$0xff]
    %v146 = vld [vmem:[#allocation5 + $0x248] sm:$0xff]
    %v147 = vld [vmem:[#allocation5 + $0x250] sm:$0xff]
    %v148 = vld [vmem:[#allocation5 + $0x258] sm:$0xff]
    %v149 = vld [vmem:[#allocation5 + $0x260] sm:$0xff]
    %v150 = vld [vmem:[#allocation5 + $0x268] sm:$0xff]
    %v151 = vld [vmem:[#allocation5 + $0x270] sm:$0xff]
    %v152 = vld [vmem:[#allocation5 + $0x278] sm:$0xff]
    %v154 = vunpack.c.l.b16 %v72
    %v155 = vunpack.c.h.b16 %v72
    %v156 = vpack.c.b16 %v154, %v154
    %v157 = vpack.c.b16 %v155, %v155
    %v239 = vunpack.c.l.b16 %v73
    %v240 = vunpack.c.h.b16 %v73
    %v241 = vunpack.c.l.b16 %v74
    %v242 = vunpack.c.h.b16 %v74
    %v243 = vunpack.c.l.b16 %v75
    %v244 = vunpack.c.h.b16 %v75
    %v245 = vunpack.c.l.b16 %v76
    %v246 = vunpack.c.h.b16 %v76
    %v247 = vunpack.c.l.b16 %v77
    %v248 = vunpack.c.h.b16 %v77
    %v249 = vunpack.c.l.b16 %v78
    %v250 = vunpack.c.h.b16 %v78
    %v251 = vunpack.c.l.b16 %v79
    %v252 = vunpack.c.h.b16 %v79
    %v253 = vunpack.c.l.b16 %v80
    %v254 = vunpack.c.h.b16 %v80
    %v255 = vunpack.c.l.b16 %v81
    %v256 = vunpack.c.h.b16 %v81
    %v257 = vunpack.c.l.b16 %v82
    %v258 = vunpack.c.h.b16 %v82
    %v259 = vunpack.c.l.b16 %v83
    %v260 = vunpack.c.h.b16 %v83
    %v261 = vunpack.c.l.b16 %v84
    %v262 = vunpack.c.h.b16 %v84
    %v263 = vunpack.c.l.b16 %v85
    %v264 = vunpack.c.h.b16 %v85
    %v265 = vunpack.c.l.b16 %v86
    %v266 = vunpack.c.h.b16 %v86
    %v267 = vunpack.c.l.b16 %v87
    %v268 = vunpack.c.h.b16 %v87
    %v269 = vunpack.c.l.b16 %v88
    %v270 = vunpack.c.h.b16 %v88
    %v271 = vunpack.c.l.b16 %v89
    %v272 = vunpack.c.h.b16 %v89
    %v273 = vunpack.c.l.b16 %v90
    %v274 = vunpack.c.h.b16 %v90
    %v275 = vunpack.c.l.b16 %v91
    %v276 = vunpack.c.h.b16 %v91
    %v277 = vunpack.c.l.b16 %v92
    %v278 = vunpack.c.h.b16 %v92
    %v279 = vunpack.c.l.b16 %v93
    %v280 = vunpack.c.h.b16 %v93
    %v281 = vunpack.c.l.b16 %v94
    %v282 = vunpack.c.h.b16 %v94
    %v283 = vunpack.c.l.b16 %v95
    %v284 = vunpack.c.h.b16 %v95
    %v285 = vunpack.c.l.b16 %v96
    %v286 = vunpack.c.h.b16 %v96
    %v287 = vunpack.c.l.b16 %v97
    %v288 = vunpack.c.h.b16 %v97
    %v289 = vunpack.c.l.b16 %v98
    %v290 = vunpack.c.h.b16 %v98
    %v291 = vunpack.c.l.b16 %v99
    %v292 = vunpack.c.h.b16 %v99
    %v293 = vunpack.c.l.b16 %v100
    %v294 = vunpack.c.h.b16 %v100
    %v295 = vunpack.c.l.b16 %v101
    %v296 = vunpack.c.h.b16 %v101
    %v297 = vunpack.c.l.b16 %v102
    %v298 = vunpack.c.h.b16 %v102
    %v299 = vunpack.c.l.b16 %v103
    %v300 = vunpack.c.h.b16 %v103
    %v301 = vunpack.c.l.b16 %v104
    %v302 = vunpack.c.h.b16 %v104
    %v303 = vunpack.c.l.b16 %v105
    %v304 = vunpack.c.h.b16 %v105
    %v305 = vunpack.c.l.b16 %v106
    %v306 = vunpack.c.h.b16 %v106
    %v307 = vunpack.c.l.b16 %v107
    %v308 = vunpack.c.h.b16 %v107
    %v309 = vunpack.c.l.b16 %v108
    %v310 = vunpack.c.h.b16 %v108
    %v311 = vunpack.c.l.b16 %v109
    %v312 = vunpack.c.h.b16 %v109
    %v313 = vunpack.c.l.b16 %v110
    %v314 = vunpack.c.h.b16 %v110
    %v315 = vunpack.c.l.b16 %v111
    %v316 = vunpack.c.h.b16 %v111
    %v317 = vunpack.c.l.b16 %v112
    %v318 = vunpack.c.h.b16 %v112
    %v319 = vunpack.c.l.b16 %v113
    %v320 = vunpack.c.h.b16 %v113
    %v321 = vunpack.c.l.b16 %v114
    %v322 = vunpack.c.h.b16 %v114
    %v323 = vunpack.c.l.b16 %v115
    %v324 = vunpack.c.h.b16 %v115
    %v325 = vunpack.c.l.b16 %v116
    %v326 = vunpack.c.h.b16 %v116
    %v327 = vunpack.c.l.b16 %v117
    %v328 = vunpack.c.h.b16 %v117
    %v329 = vunpack.c.l.b16 %v118
    %v330 = vunpack.c.h.b16 %v118
    %v331 = vunpack.c.l.b16 %v119
    %v332 = vunpack.c.h.b16 %v119
    %v333 = vunpack.c.l.b16 %v120
    %v334 = vunpack.c.h.b16 %v120
    %v335 = vunpack.c.l.b16 %v121
    %v336 = vunpack.c.h.b16 %v121
    %v337 = vunpack.c.l.b16 %v122
    %v338 = vunpack.c.h.b16 %v122
    %v339 = vunpack.c.l.b16 %v123
    %v340 = vunpack.c.h.b16 %v123
    %v341 = vunpack.c.l.b16 %v124
    %v342 = vunpack.c.h.b16 %v124
    %v343 = vunpack.c.l.b16 %v125
    %v344 = vunpack.c.h.b16 %v125
    %v345 = vunpack.c.l.b16 %v126
    %v346 = vunpack.c.h.b16 %v126
    %v347 = vunpack.c.l.b16 %v127
    %v348 = vunpack.c.h.b16 %v127
    %v349 = vunpack.c.l.b16 %v128
    %v350 = vunpack.c.h.b16 %v128
    %v351 = vunpack.c.l.b16 %v129
    %v352 = vunpack.c.h.b16 %v129
    %v353 = vunpack.c.l.b16 %v130
    %v354 = vunpack.c.h.b16 %v130
    %v355 = vunpack.c.l.b16 %v131
    %v356 = vunpack.c.h.b16 %v131
    %v357 = vunpack.c.l.b16 %v132
    %v358 = vunpack.c.h.b16 %v132
    %v359 = vunpack.c.l.b16 %v133
    %v360 = vunpack.c.h.b16 %v133
    %v361 = vunpack.c.l.b16 %v134
    %v362 = vunpack.c.h.b16 %v134
    %v363 = vunpack.c.l.b16 %v135
    %v364 = vunpack.c.h.b16 %v135
    %v365 = vunpack.c.l.b16 %v136
    %v366 = vunpack.c.h.b16 %v136
    %v367 = vunpack.c.l.b16 %v137
    %v368 = vunpack.c.h.b16 %v137
    %v369 = vunpack.c.l.b16 %v138
    %v370 = vunpack.c.h.b16 %v138
    %v371 = vunpack.c.l.b16 %v139
    %v372 = vunpack.c.h.b16 %v139
    %v373 = vunpack.c.l.b16 %v140
    %v374 = vunpack.c.h.b16 %v140
    %v375 = vunpack.c.l.b16 %v141
    %v376 = vunpack.c.h.b16 %v141
    %v377 = vunpack.c.l.b16 %v142
    %v378 = vunpack.c.h.b16 %v142
    %v379 = vunpack.c.l.b16 %v143
    %v380 = vunpack.c.h.b16 %v143
    %v381 = vunpack.c.l.b16 %v144
    %v382 = vunpack.c.h.b16 %v144
    %v383 = vunpack.c.l.b16 %v145
    %v384 = vunpack.c.h.b16 %v145
    %v385 = vunpack.c.l.b16 %v146
    %v386 = vunpack.c.h.b16 %v146
    %v387 = vunpack.c.l.b16 %v147
    %v388 = vunpack.c.h.b16 %v147
    %v389 = vunpack.c.l.b16 %v148
    %v390 = vunpack.c.h.b16 %v148
    %v391 = vunpack.c.l.b16 %v149
    %v392 = vunpack.c.h.b16 %v149
    %v393 = vunpack.c.l.b16 %v150
    %v394 = vunpack.c.h.b16 %v150
    %v395 = vunpack.c.l.b16 %v151
    %v396 = vunpack.c.h.b16 %v151
    %v397 = vunpack.c.l.b16 %v152
    %v398 = vunpack.c.h.b16 %v152
    %v399 = vpack.c.b16 %v247, %v239
    %v400 = vpack.c.b16 %v248, %v240
    %v401 = vpack.c.b16 %v249, %v241
    %v402 = vpack.c.b16 %v250, %v242
    %v403 = vpack.c.b16 %v251, %v243
    %v404 = vpack.c.b16 %v252, %v244
    %v405 = vpack.c.b16 %v253, %v245
    %v406 = vpack.c.b16 %v254, %v246
    %v407 = vpack.c.b16 %v263, %v255
    %v408 = vpack.c.b16 %v264, %v256
    %v409 = vpack.c.b16 %v265, %v257
    %v410 = vpack.c.b16 %v266, %v258
    %v411 = vpack.c.b16 %v267, %v259
    %v412 = vpack.c.b16 %v268, %v260
    %v413 = vpack.c.b16 %v269, %v261
    %v414 = vpack.c.b16 %v270, %v262
    %v415 = vpack.c.b16 %v279, %v271
    %v416 = vpack.c.b16 %v280, %v272
    %v417 = vpack.c.b16 %v281, %v273
    %v418 = vpack.c.b16 %v282, %v274
    %v419 = vpack.c.b16 %v283, %v275
    %v420 = vpack.c.b16 %v284, %v276
    %v421 = vpack.c.b16 %v285, %v277
    %v422 = vpack.c.b16 %v286, %v278
    %v423 = vpack.c.b16 %v295, %v287
    %v424 = vpack.c.b16 %v296, %v288
    %v425 = vpack.c.b16 %v297, %v289
    %v426 = vpack.c.b16 %v298, %v290
    %v427 = vpack.c.b16 %v299, %v291
    %v428 = vpack.c.b16 %v300, %v292
    %v429 = vpack.c.b16 %v301, %v293
    %v430 = vpack.c.b16 %v302, %v294
    %v431 = vpack.c.b16 %v311, %v303
    %v432 = vpack.c.b16 %v312, %v304
    %v433 = vpack.c.b16 %v313, %v305
    %v434 = vpack.c.b16 %v314, %v306
    %v435 = vpack.c.b16 %v315, %v307
    %v436 = vpack.c.b16 %v316, %v308
    %v437 = vpack.c.b16 %v317, %v309
    %v438 = vpack.c.b16 %v318, %v310
    %v439 = vpack.c.b16 %v327, %v319
    %v440 = vpack.c.b16 %v328, %v320
    %v441 = vpack.c.b16 %v329, %v321
    %v442 = vpack.c.b16 %v330, %v322
    %v443 = vpack.c.b16 %v331, %v323
    %v444 = vpack.c.b16 %v332, %v324
    %v445 = vpack.c.b16 %v333, %v325
    %v446 = vpack.c.b16 %v334, %v326
    %v447 = vpack.c.b16 %v343, %v335
    %v448 = vpack.c.b16 %v344, %v336
    %v449 = vpack.c.b16 %v345, %v337
    %v450 = vpack.c.b16 %v346, %v338
    %v451 = vpack.c.b16 %v347, %v339
    %v452 = vpack.c.b16 %v348, %v340
    %v453 = vpack.c.b16 %v349, %v341
    %v454 = vpack.c.b16 %v350, %v342
    %v455 = vpack.c.b16 %v359, %v351
    %v456 = vpack.c.b16 %v360, %v352
    %v457 = vpack.c.b16 %v361, %v353
    %v458 = vpack.c.b16 %v362, %v354
    %v459 = vpack.c.b16 %v363, %v355
    %v460 = vpack.c.b16 %v364, %v356
    %v461 = vpack.c.b16 %v365, %v357
    %v462 = vpack.c.b16 %v366, %v358
    %v463 = vpack.c.b16 %v375, %v367
    %v464 = vpack.c.b16 %v376, %v368
    %v465 = vpack.c.b16 %v377, %v369
    %v466 = vpack.c.b16 %v378, %v370
    %v467 = vpack.c.b16 %v379, %v371
    %v468 = vpack.c.b16 %v380, %v372
    %v469 = vpack.c.b16 %v381, %v373
    %v470 = vpack.c.b16 %v382, %v374
    %v471 = vpack.c.b16 %v391, %v383
    %v472 = vpack.c.b16 %v392, %v384
    %v473 = vpack.c.b16 %v393, %v385
    %v474 = vpack.c.b16 %v394, %v386
    %v475 = vpack.c.b16 %v395, %v387
    %v476 = vpack.c.b16 %v396, %v388
    %v477 = vpack.c.b16 %v397, %v389
    %v478 = vpack.c.b16 %v398, %v390
    %vm559 = vcmask 261120
    %v561 = vsel %vm559, %v157, 0
    %563 = vmatprep.subr.bf16.mxu0 %v400
    %564 = vmatpush1.bf16.msra.mxu0 %v399
    %565 = vmatprep.subr.bf16.mxu0 %v408
    %566 = vmatpush1.bf16.msra.mxu0 %v407
    %567 = vmatprep.subr.bf16.mxu0 %v416
    %568 = vmatpush1.bf16.msra.mxu0 %v415
    %569 = vmatprep.subr.bf16.mxu0 %v424
    %570 = vmatpush1.bf16.msra.mxu0 %v423
    %571 = vmatprep.subr.bf16.mxu0 %v432
    %572 = vmatpush1.bf16.msra.mxu0 %v431
    %573 = vmatprep.subr.bf16.mxu0 %v440
    %574 = vmatpush1.bf16.msra.mxu0 %v439
    %575 = vmatprep.subr.bf16.mxu0 %v448
    %576 = vmatpush1.bf16.msra.mxu0 %v447
    %577 = vmatprep.subr.bf16.mxu0 %v456
    %578 = vmatpush1.bf16.msra.mxu0 %v455
    %579 = vmatprep.subr.bf16.mxu0 %v464
    %580 = vmatpush1.bf16.msra.mxu0 %v463
    %581 = vmatprep.subr.bf16.mxu0 %v472
    %582 = vmatpush1.bf16.msra.mxu0 %v471
    %583 = vmatprep.subr.bf16.mxu0 0
    %584 = vmatpush1.bf16.msra.mxu0 0
    %585 = vmatprep.subr.bf16.mxu0 0
    %586 = vmatpush1.bf16.msra.mxu0 0
    %587 = vmatprep.subr.bf16.mxu0 0
    %588 = vmatpush1.bf16.msra.mxu0 0
    %589 = vmatprep.subr.bf16.mxu0 0
    %590 = vmatpush1.bf16.msra.mxu0 0
    %591 = vmatprep.subr.bf16.mxu0 0
    %592 = vmatpush1.bf16.msra.mxu0 0
    %593 = vmatprep.subr.bf16.mxu0 0
    %594 = vmatpush1.bf16.msra.mxu0 0
    %595 = vmatprep.mubr.bf16.mxu0 %v561
    %596 = vmatmul.mubr.bf16.gmra.mrb[0].mxu0 %v156
    %v597 = vpop.f32.mrb[0].mxu0
    %v598 = vadd.f32 0.0, %v597
    %v599 = vpop.f32.mrb[0].mxu0
    %v600 = vadd.f32 0.0, %v599
    %v601 = vpop.f32.mrb[0].mxu0
    %v602 = vpop.f32.mrb[0].mxu0
    %603 = vdwg.mxu0
    %604 = vmatprep.subr.bf16.mxu0 %v402
    %605 = vmatpush1.bf16.msra.mxu0 %v401
    %606 = vmatprep.subr.bf16.mxu0 %v410
    %607 = vmatpush1.bf16.msra.mxu0 %v409
    %608 = vmatprep.subr.bf16.mxu0 %v418
    %609 = vmatpush1.bf16.msra.mxu0 %v417
    %610 = vmatprep.subr.bf16.mxu0 %v426
    %611 = vmatpush1.bf16.msra.mxu0 %v425
    %612 = vmatprep.subr.bf16.mxu0 %v434
    %613 = vmatpush1.bf16.msra.mxu0 %v433
    %614 = vmatprep.subr.bf16.mxu0 %v442
    %615 = vmatpush1.bf16.msra.mxu0 %v441
    %616 = vmatprep.subr.bf16.mxu0 %v450
    %617 = vmatpush1.bf16.msra.mxu0 %v449
    %618 = vmatprep.subr.bf16.mxu0 %v458
    %619 = vmatpush1.bf16.msra.mxu0 %v457
    %620 = vmatprep.subr.bf16.mxu0 %v466
    %621 = vmatpush1.bf16.msra.mxu0 %v465
    %622 = vmatprep.subr.bf16.mxu0 %v474
    %623 = vmatpush1.bf16.msra.mxu0 %v473
    %624 = vmatprep.subr.bf16.mxu0 0
    %625 = vmatpush1.bf16.msra.mxu0 0
    %626 = vmatprep.subr.bf16.mxu0 0
    %627 = vmatpush1.bf16.msra.mxu0 0
    %628 = vmatprep.subr.bf16.mxu0 0
    %629 = vmatpush1.bf16.msra.mxu0 0
    %630 = vmatprep.subr.bf16.mxu0 0
    %631 = vmatpush1.bf16.msra.mxu0 0
    %632 = vmatprep.subr.bf16.mxu0 0
    %633 = vmatpush1.bf16.msra.mxu0 0
    %634 = vmatprep.subr.bf16.mxu0 0
    %635 = vmatpush1.bf16.msra.mxu0 0
    %636 = vmatprep.mubr.bf16.mxu0 %v561
    %637 = vmatmul.mubr.bf16.gmra.mrb[0].mxu0 %v156
    %v638 = vpop.f32.mrb[0].mxu0
    %v639 = vadd.f32 0.0, %v638
    %v640 = vpop.f32.mrb[0].mxu0
    %v641 = vadd.f32 0.0, %v640
    %v642 = vpop.f32.mrb[0].mxu0
    %v643 = vpop.f32.mrb[0].mxu0
    %644 = vdwg.mxu0
    %645 = vmatprep.subr.bf16.mxu0 %v404
    %646 = vmatpush1.bf16.msra.mxu0 %v403
    %647 = vmatprep.subr.bf16.mxu0 %v412
    %648 = vmatpush1.bf16.msra.mxu0 %v411
    %649 = vmatprep.subr.bf16.mxu0 %v420
    %650 = vmatpush1.bf16.msra.mxu0 %v419
    %651 = vmatprep.subr.bf16.mxu0 %v428
    %652 = vmatpush1.bf16.msra.mxu0 %v427
    %653 = vmatprep.subr.bf16.mxu0 %v436
    %654 = vmatpush1.bf16.msra.mxu0 %v435
    %655 = vmatprep.subr.bf16.mxu0 %v444
    %656 = vmatpush1.bf16.msra.mxu0 %v443
    %657 = vmatprep.subr.bf16.mxu0 %v452
    %658 = vmatpush1.bf16.msra.mxu0 %v451
    %659 = vmatprep.subr.bf16.mxu0 %v460
    %660 = vmatpush1.bf16.msra.mxu0 %v459
    %661 = vmatprep.subr.bf16.mxu0 %v468
    %662 = vmatpush1.bf16.msra.mxu0 %v467
    %663 = vmatprep.subr.bf16.mxu0 %v476
    %664 = vmatpush1.bf16.msra.mxu0 %v475
    %665 = vmatprep.subr.bf16.mxu0 0
    %666 = vmatpush1.bf16.msra.mxu0 0
    %667 = vmatprep.subr.bf16.mxu0 0
    %668 = vmatpush1.bf16.msra.mxu0 0
    %669 = vmatprep.subr.bf16.mxu0 0
    %670 = vmatpush1.bf16.msra.mxu0 0
    %671 = vmatprep.subr.bf16.mxu0 0
    %672 = vmatpush1.bf16.msra.mxu0 0
    %673 = vmatprep.subr.bf16.mxu0 0
    %674 = vmatpush1.bf16.msra.mxu0 0
    %675 = vmatprep.subr.bf16.mxu0 0
    %676 = vmatpush1.bf16.msra.mxu0 0
    %677 = vmatprep.mubr.bf16.mxu0 %v561
    %678 = vmatmul.mubr.bf16.gmra.mrb[0].mxu0 %v156
    %v679 = vpop.f32.mrb[0].mxu0
    %v680 = vadd.f32 0.0, %v679
    %v681 = vpop.f32.mrb[0].mxu0
    %v682 = vadd.f32 0.0, %v681
    %v683 = vpop.f32.mrb[0].mxu0
    %v684 = vpop.f32.mrb[0].mxu0
    %685 = vdwg.mxu0
    %686 = vmatprep.subr.bf16.mxu0 %v406
    %687 = vmatpush1.bf16.msra.mxu0 %v405
    %688 = vmatprep.subr.bf16.mxu0 %v414
    %689 = vmatpush1.bf16.msra.mxu0 %v413
    %690 = vmatprep.subr.bf16.mxu0 %v422
    %691 = vmatpush1.bf16.msra.mxu0 %v421
    %692 = vmatprep.subr.bf16.mxu0 %v430
    %693 = vmatpush1.bf16.msra.mxu0 %v429
    %694 = vmatprep.subr.bf16.mxu0 %v438
    %695 = vmatpush1.bf16.msra.mxu0 %v437
    %696 = vmatprep.subr.bf16.mxu0 %v446
    %697 = vmatpush1.bf16.msra.mxu0 %v445
    %698 = vmatprep.subr.bf16.mxu0 %v454
    %699 = vmatpush1.bf16.msra.mxu0 %v453
    %700 = vmatprep.subr.bf16.mxu0 %v462
    %701 = vmatpush1.bf16.msra.mxu0 %v461
    %702 = vmatprep.subr.bf16.mxu0 %v470
    %703 = vmatpush1.bf16.msra.mxu0 %v469
    %704 = vmatprep.subr.bf16.mxu0 %v478
    %705 = vmatpush1.bf16.msra.mxu0 %v477
    %706 = vmatprep.subr.bf16.mxu0 0
    %707 = vmatpush1.bf16.msra.mxu0 0
    %708 = vmatprep.subr.bf16.mxu0 0
    %709 = vmatpush1.bf16.msra.mxu0 0
    %710 = vmatprep.subr.bf16.mxu0 0
    %711 = vmatpush1.bf16.msra.mxu0 0
    %712 = vmatprep.subr.bf16.mxu0 0
    %713 = vmatpush1.bf16.msra.mxu0 0
    %714 = vmatprep.subr.bf16.mxu0 0
    %715 = vmatpush1.bf16.msra.mxu0 0
    %716 = vmatprep.subr.bf16.mxu0 0
    %717 = vmatpush1.bf16.msra.mxu0 0
    %718 = vmatprep.mubr.bf16.mxu0 %v561
    %719 = vmatmul.mubr.bf16.gmra.mrb[0].mxu0 %v156
    %v720 = vpop.f32.mrb[0].mxu0
    %v721 = vadd.f32 0.0, %v720
    %v722 = vpop.f32.mrb[0].mxu0
    %v723 = vadd.f32 0.0, %v722
    %v724 = vpop.f32.mrb[0].mxu0
    %v725 = vpop.f32.mrb[0].mxu0
    %726 = vdwg.mxu0
    %v727 = vmax.f32 %v598, 0.0
    %v728 = vmax.f32 %v600, 0.0
    %v729 = vmax.f32 %v639, 0.0
    %v730 = vmax.f32 %v641, 0.0
    %v731 = vmax.f32 %v680, 0.0
    %v732 = vmax.f32 %v682, 0.0
    %v733 = vmax.f32 %v721, 0.0
    %v734 = vmax.f32 %v723, 0.0
    %v735 = vpack.c.bf16 %v727, %v727
    %v736 = vpack.c.bf16 %v728, %v728
    %v737 = vpack.c.bf16 %v729, %v729
    %v738 = vpack.c.bf16 %v730, %v730
    %v739 = vpack.c.bf16 %v731, %v731
    %v740 = vpack.c.bf16 %v732, %v732
    %v741 = vpack.c.bf16 %v733, %v733
    %v742 = vpack.c.bf16 %v734, %v734
    %v743 = vld [vmem:[#allocation7] sm:$0xf]
    %v744 = vld [vmem:[#allocation7 + $0x4] sm:$0xf]
    %v745 = vld [vmem:[#allocation7 + $0x8] sm:$0xf]
    %v746 = vld [vmem:[#allocation7 + $0xc] sm:$0xf]
    %v747 = vld [vmem:[#allocation7 + $0x10] sm:$0xf]
    %v748 = vld [vmem:[#allocation7 + $0x14] sm:$0xf]
    %v749 = vld [vmem:[#allocation7 + $0x18] sm:$0xf]
    %v750 = vld [vmem:[#allocation7 + $0x1c] sm:$0xf]
    %v751 = vld [vmem:[#allocation7 + $0x20] sm:$0xf]
    %v752 = vld [vmem:[#allocation7 + $0x24] sm:$0xf]
    %v753 = vld [vmem:[#allocation7 + $0x28] sm:$0xf]
    %v754 = vld [vmem:[#allocation7 + $0x2c] sm:$0xf]
    %v755 = vld [vmem:[#allocation7 + $0x30] sm:$0xf]
    %v756 = vld [vmem:[#allocation7 + $0x34] sm:$0xf]
    %v757 = vld [vmem:[#allocation7 + $0x38] sm:$0xf]
    %v758 = vld [vmem:[#allocation7 + $0x3c] sm:$0xf]
    %v759 = vld [vmem:[#allocation7 + $0x40] sm:$0xf]
    %v760 = vld [vmem:[#allocation7 + $0x44] sm:$0xf]
    %v761 = vld [vmem:[#allocation7 + $0x48] sm:$0xf]
    %v762 = vld [vmem:[#allocation7 + $0x4c] sm:$0xf]
    %v763 = vld [vmem:[#allocation7 + $0x50] sm:$0xf]
    %v764 = vld [vmem:[#allocation7 + $0x54] sm:$0xf]
    %v765 = vld [vmem:[#allocation7 + $0x58] sm:$0xf]
    %v766 = vld [vmem:[#allocation7 + $0x5c] sm:$0xf]
    %v767 = vld [vmem:[#allocation7 + $0x60] sm:$0xf]
    %v768 = vld [vmem:[#allocation7 + $0x64] sm:$0xf]
    %v769 = vld [vmem:[#allocation7 + $0x68] sm:$0xf]
    %v770 = vld [vmem:[#allocation7 + $0x6c] sm:$0xf]
    %v771 = vld [vmem:[#allocation7 + $0x70] sm:$0xf]
    %v772 = vld [vmem:[#allocation7 + $0x74] sm:$0xf]
    %v773 = vld [vmem:[#allocation7 + $0x78] sm:$0xf]
    %v774 = vld [vmem:[#allocation7 + $0x7c] sm:$0xf]
    %v775 = vld [vmem:[#allocation7 + $0x80] sm:$0xf]
    %v776 = vld [vmem:[#allocation7 + $0x84] sm:$0xf]
    %v777 = vld [vmem:[#allocation7 + $0x88] sm:$0xf]
    %v778 = vld [vmem:[#allocation7 + $0x8c] sm:$0xf]
    %v779 = vld [vmem:[#allocation7 + $0x90] sm:$0xf]
    %v780 = vld [vmem:[#allocation7 + $0x94] sm:$0xf]
    %v781 = vld [vmem:[#allocation7 + $0x98] sm:$0xf]
    %v782 = vld [vmem:[#allocation7 + $0x9c] sm:$0xf]
    %v783 = vld [vmem:[#allocation7 + $0xa0] sm:$0xf]
    %v784 = vld [vmem:[#allocation7 + $0xa4] sm:$0xf]
    %v785 = vld [vmem:[#allocation7 + $0xa8] sm:$0xf]
    %v786 = vld [vmem:[#allocation7 + $0xac] sm:$0xf]
    %v787 = vld [vmem:[#allocation7 + $0xb0] sm:$0xf]
    %v788 = vld [vmem:[#allocation7 + $0xb4] sm:$0xf]
    %v789 = vld [vmem:[#allocation7 + $0xb8] sm:$0xf]
    %v790 = vld [vmem:[#allocation7 + $0xbc] sm:$0xf]
    %v791 = vld [vmem:[#allocation7 + $0xc0] sm:$0xf]
    %v792 = vld [vmem:[#allocation7 + $0xc4] sm:$0xf]
    %v793 = vld [vmem:[#allocation7 + $0xc8] sm:$0xf]
    %v794 = vld [vmem:[#allocation7 + $0xcc] sm:$0xf]
    %v795 = vld [vmem:[#allocation7 + $0xd0] sm:$0xf]
    %v796 = vld [vmem:[#allocation7 + $0xd4] sm:$0xf]
    %v797 = vld [vmem:[#allocation7 + $0xd8] sm:$0xf]
    %v798 = vld [vmem:[#allocation7 + $0xdc] sm:$0xf]
    %v799 = vld [vmem:[#allocation7 + $0xe0] sm:$0xf]
    %v800 = vld [vmem:[#allocation7 + $0xe4] sm:$0xf]
    %v801 = vld [vmem:[#allocation7 + $0xe8] sm:$0xf]
    %v802 = vld [vmem:[#allocation7 + $0xec] sm:$0xf]
    %v803 = vld [vmem:[#allocation7 + $0xf0] sm:$0xf]
    %v804 = vld [vmem:[#allocation7 + $0xf4] sm:$0xf]
    %v805 = vld [vmem:[#allocation7 + $0xf8] sm:$0xf]
    %v806 = vld [vmem:[#allocation7 + $0xfc] sm:$0xf]
    %v807 = vld [vmem:[#allocation7 + $0x100] sm:$0xf]
    %v808 = vld [vmem:[#allocation7 + $0x104] sm:$0xf]
    %v809 = vld [vmem:[#allocation7 + $0x108] sm:$0xf]
    %v810 = vld [vmem:[#allocation7 + $0x10c] sm:$0xf]
    %v811 = vld [vmem:[#allocation7 + $0x110] sm:$0xf]
    %v812 = vld [vmem:[#allocation7 + $0x114] sm:$0xf]
    %v813 = vld [vmem:[#allocation7 + $0x118] sm:$0xf]
    %v814 = vld [vmem:[#allocation7 + $0x11c] sm:$0xf]
    %v815 = vld [vmem:[#allocation7 + $0x120] sm:$0xf]
    %v816 = vld [vmem:[#allocation7 + $0x124] sm:$0xf]
    %v817 = vld [vmem:[#allocation7 + $0x128] sm:$0xf]
    %v818 = vld [vmem:[#allocation7 + $0x12c] sm:$0xf]
    %v819 = vld [vmem:[#allocation7 + $0x130] sm:$0xf]
    %v820 = vld [vmem:[#allocation7 + $0x134] sm:$0xf]
    %v821 = vld [vmem:[#allocation7 + $0x138] sm:$0xf]
    %v822 = vld [vmem:[#allocation7 + $0x13c] sm:$0xf]
    %v823 = vld [vmem:[#allocation7 + $0x140] sm:$0xf]
    %v824 = vld [vmem:[#allocation7 + $0x144] sm:$0xf]
    %v825 = vld [vmem:[#allocation7 + $0x148] sm:$0xf]
    %v826 = vld [vmem:[#allocation7 + $0x14c] sm:$0xf]
    %v827 = vld [vmem:[#allocation7 + $0x150] sm:$0xf]
    %v828 = vld [vmem:[#allocation7 + $0x154] sm:$0xf]
    %v829 = vld [vmem:[#allocation7 + $0x158] sm:$0xf]
    %v830 = vld [vmem:[#allocation7 + $0x15c] sm:$0xf]
    %v831 = vld [vmem:[#allocation7 + $0x160] sm:$0xf]
    %v832 = vld [vmem:[#allocation7 + $0x164] sm:$0xf]
    %v833 = vld [vmem:[#allocation7 + $0x168] sm:$0xf]
    %v834 = vld [vmem:[#allocation7 + $0x16c] sm:$0xf]
    %v835 = vld [vmem:[#allocation7 + $0x170] sm:$0xf]
    %v836 = vld [vmem:[#allocation7 + $0x174] sm:$0xf]
    %v837 = vld [vmem:[#allocation7 + $0x178] sm:$0xf]
    %v838 = vld [vmem:[#allocation7 + $0x17c] sm:$0xf]
    %v839 = vld [vmem:[#allocation7 + $0x180] sm:$0xf]
    %v840 = vld [vmem:[#allocation7 + $0x184] sm:$0xf]
    %v841 = vld [vmem:[#allocation7 + $0x188] sm:$0xf]
    %v842 = vld [vmem:[#allocation7 + $0x18c] sm:$0xf]
    %v843 = vld [vmem:[#allocation7 + $0x190] sm:$0xf]
    %v844 = vld [vmem:[#allocation7 + $0x194] sm:$0xf]
    %v845 = vld [vmem:[#allocation7 + $0x198] sm:$0xf]
    %v846 = vld [vmem:[#allocation7 + $0x19c] sm:$0xf]
    %v847 = vld [vmem:[#allocation7 + $0x1a0] sm:$0xf]
    %v848 = vld [vmem:[#allocation7 + $0x1a4] sm:$0xf]
    %v849 = vld [vmem:[#allocation7 + $0x1a8] sm:$0xf]
    %v850 = vld [vmem:[#allocation7 + $0x1ac] sm:$0xf]
    %v851 = vld [vmem:[#allocation7 + $0x1b0] sm:$0xf]
    %v852 = vld [vmem:[#allocation7 + $0x1b4] sm:$0xf]
    %v853 = vld [vmem:[#allocation7 + $0x1b8] sm:$0xf]
    %v854 = vld [vmem:[#allocation7 + $0x1bc] sm:$0xf]
    %v855 = vld [vmem:[#allocation7 + $0x1c0] sm:$0xf]
    %v856 = vld [vmem:[#allocation7 + $0x1c4] sm:$0xf]
    %v857 = vld [vmem:[#allocation7 + $0x1c8] sm:$0xf]
    %v858 = vld [vmem:[#allocation7 + $0x1cc] sm:$0xf]
    %v859 = vld [vmem:[#allocation7 + $0x1d0] sm:$0xf]
    %v860 = vld [vmem:[#allocation7 + $0x1d4] sm:$0xf]
    %v861 = vld [vmem:[#allocation7 + $0x1d8] sm:$0xf]
    %v862 = vld [vmem:[#allocation7 + $0x1dc] sm:$0xf]
    %v863 = vld [vmem:[#allocation7 + $0x1e0] sm:$0xf]
    %v864 = vld [vmem:[#allocation7 + $0x1e4] sm:$0xf]
    %v865 = vld [vmem:[#allocation7 + $0x1e8] sm:$0xf]
    %v866 = vld [vmem:[#allocation7 + $0x1ec] sm:$0xf]
    %v867 = vld [vmem:[#allocation7 + $0x1f0] sm:$0xf]
    %v868 = vld [vmem:[#allocation7 + $0x1f4] sm:$0xf]
    %v869 = vld [vmem:[#allocation7 + $0x1f8] sm:$0xf]
    %v870 = vld [vmem:[#allocation7 + $0x1fc] sm:$0xf]
    %v999 = vunpack.c.l.b16 %v743
    %v1000 = vunpack.c.l.b16 %v744
    %v1001 = vunpack.c.l.b16 %v745
    %v1002 = vunpack.c.l.b16 %v746
    %v1003 = vunpack.c.l.b16 %v747
    %v1004 = vunpack.c.l.b16 %v748
    %v1005 = vunpack.c.l.b16 %v749
    %v1006 = vunpack.c.l.b16 %v750
    %v1007 = vunpack.c.l.b16 %v751
    %v1008 = vunpack.c.l.b16 %v752
    %v1009 = vunpack.c.l.b16 %v753
    %v1010 = vunpack.c.l.b16 %v754
    %v1011 = vunpack.c.l.b16 %v755
    %v1012 = vunpack.c.l.b16 %v756
    %v1013 = vunpack.c.l.b16 %v757
    %v1014 = vunpack.c.l.b16 %v758
    %v1015 = vunpack.c.l.b16 %v759
    %v1016 = vunpack.c.l.b16 %v760
    %v1017 = vunpack.c.l.b16 %v761
    %v1018 = vunpack.c.l.b16 %v762
    %v1019 = vunpack.c.l.b16 %v763
    %v1020 = vunpack.c.l.b16 %v764
    %v1021 = vunpack.c.l.b16 %v765
    %v1022 = vunpack.c.l.b16 %v766
    %v1023 = vunpack.c.l.b16 %v767
    %v1024 = vunpack.c.l.b16 %v768
    %v1025 = vunpack.c.l.b16 %v769
    %v1026 = vunpack.c.l.b16 %v770
    %v1027 = vunpack.c.l.b16 %v771
    %v1028 = vunpack.c.l.b16 %v772
    %v1029 = vunpack.c.l.b16 %v773
    %v1030 = vunpack.c.l.b16 %v774
    %v1031 = vunpack.c.l.b16 %v775
    %v1032 = vunpack.c.l.b16 %v776
    %v1033 = vunpack.c.l.b16 %v777
    %v1034 = vunpack.c.l.b16 %v778
    %v1035 = vunpack.c.l.b16 %v779
    %v1036 = vunpack.c.l.b16 %v780
    %v1037 = vunpack.c.l.b16 %v781
    %v1038 = vunpack.c.l.b16 %v782
    %v1039 = vunpack.c.l.b16 %v783
    %v1040 = vunpack.c.l.b16 %v784
    %v1041 = vunpack.c.l.b16 %v785
    %v1042 = vunpack.c.l.b16 %v786
    %v1043 = vunpack.c.l.b16 %v787
    %v1044 = vunpack.c.l.b16 %v788
    %v1045 = vunpack.c.l.b16 %v789
    %v1046 = vunpack.c.l.b16 %v790
    %v1047 = vunpack.c.l.b16 %v791
    %v1048 = vunpack.c.l.b16 %v792
    %v1049 = vunpack.c.l.b16 %v793
    %v1050 = vunpack.c.l.b16 %v794
    %v1051 = vunpack.c.l.b16 %v795
    %v1052 = vunpack.c.l.b16 %v796
    %v1053 = vunpack.c.l.b16 %v797
    %v1054 = vunpack.c.l.b16 %v798
    %v1055 = vunpack.c.l.b16 %v799
    %v1056 = vunpack.c.l.b16 %v800
    %v1057 = vunpack.c.l.b16 %v801
    %v1058 = vunpack.c.l.b16 %v802
    %v1059 = vunpack.c.l.b16 %v803
    %v1060 = vunpack.c.l.b16 %v804
    %v1061 = vunpack.c.l.b16 %v805
    %v1062 = vunpack.c.l.b16 %v806
    %v1063 = vunpack.c.l.b16 %v807
    %v1064 = vunpack.c.l.b16 %v808
    %v1065 = vunpack.c.l.b16 %v809
    %v1066 = vunpack.c.l.b16 %v810
    %v1067 = vunpack.c.l.b16 %v811
    %v1068 = vunpack.c.l.b16 %v812
    %v1069 = vunpack.c.l.b16 %v813
    %v1070 = vunpack.c.l.b16 %v814
    %v1071 = vunpack.c.l.b16 %v815
    %v1072 = vunpack.c.l.b16 %v816
    %v1073 = vunpack.c.l.b16 %v817
    %v1074 = vunpack.c.l.b16 %v818
    %v1075 = vunpack.c.l.b16 %v819
    %v1076 = vunpack.c.l.b16 %v820
    %v1077 = vunpack.c.l.b16 %v821
    %v1078 = vunpack.c.l.b16 %v822
    %v1079 = vunpack.c.l.b16 %v823
    %v1080 = vunpack.c.l.b16 %v824
    %v1081 = vunpack.c.l.b16 %v825
    %v1082 = vunpack.c.l.b16 %v826
    %v1083 = vunpack.c.l.b16 %v827
    %v1084 = vunpack.c.l.b16 %v828
    %v1085 = vunpack.c.l.b16 %v829
    %v1086 = vunpack.c.l.b16 %v830
    %v1087 = vunpack.c.l.b16 %v831
    %v1088 = vunpack.c.l.b16 %v832
    %v1089 = vunpack.c.l.b16 %v833
    %v1090 = vunpack.c.l.b16 %v834
    %v1091 = vunpack.c.l.b16 %v835
    %v1092 = vunpack.c.l.b16 %v836
    %v1093 = vunpack.c.l.b16 %v837
    %v1094 = vunpack.c.l.b16 %v838
    %v1095 = vunpack.c.l.b16 %v839
    %v1096 = vunpack.c.l.b16 %v840
    %v1097 = vunpack.c.l.b16 %v841
    %v1098 = vunpack.c.l.b16 %v842
    %v1099 = vunpack.c.l.b16 %v843
    %v1100 = vunpack.c.l.b16 %v844
    %v1101 = vunpack.c.l.b16 %v845
    %v1102 = vunpack.c.l.b16 %v846
    %v1103 = vunpack.c.l.b16 %v847
    %v1104 = vunpack.c.l.b16 %v848
    %v1105 = vunpack.c.l.b16 %v849
    %v1106 = vunpack.c.l.b16 %v850
    %v1107 = vunpack.c.l.b16 %v851
    %v1108 = vunpack.c.l.b16 %v852
    %v1109 = vunpack.c.l.b16 %v853
    %v1110 = vunpack.c.l.b16 %v854
    %v1111 = vunpack.c.l.b16 %v855
    %v1112 = vunpack.c.l.b16 %v856
    %v1113 = vunpack.c.l.b16 %v857
    %v1114 = vunpack.c.l.b16 %v858
    %v1115 = vunpack.c.l.b16 %v859
    %v1116 = vunpack.c.l.b16 %v860
    %v1117 = vunpack.c.l.b16 %v861
    %v1118 = vunpack.c.l.b16 %v862
    %v1119 = vunpack.c.l.b16 %v863
    %v1120 = vunpack.c.l.b16 %v864
    %v1121 = vunpack.c.l.b16 %v865
    %v1122 = vunpack.c.l.b16 %v866
    %v1123 = vunpack.c.l.b16 %v867
    %v1124 = vunpack.c.l.b16 %v868
    %v1125 = vunpack.c.l.b16 %v869
    %v1126 = vunpack.c.l.b16 %v870
    %v1127 = vpack.c.b16 %v1000, %v999
    %v1128 = vpack.c.b16 %v1002, %v1001
    %v1129 = vpack.c.b16 %v1004, %v1003
    %v1130 = vpack.c.b16 %v1006, %v1005
    %v1131 = vpack.c.b16 %v1008, %v1007
    %v1132 = vpack.c.b16 %v1010, %v1009
    %v1133 = vpack.c.b16 %v1012, %v1011
    %v1134 = vpack.c.b16 %v1014, %v1013
    %v1135 = vpack.c.b16 %v1016, %v1015
    %v1136 = vpack.c.b16 %v1018, %v1017
    %v1137 = vpack.c.b16 %v1020, %v1019
    %v1138 = vpack.c.b16 %v1022, %v1021
    %v1139 = vpack.c.b16 %v1024, %v1023
    %v1140 = vpack.c.b16 %v1026, %v1025
    %v1141 = vpack.c.b16 %v1028, %v1027
    %v1142 = vpack.c.b16 %v1030, %v1029
    %v1143 = vpack.c.b16 %v1032, %v1031
    %v1144 = vpack.c.b16 %v1034, %v1033
    %v1145 = vpack.c.b16 %v1036, %v1035
    %v1146 = vpack.c.b16 %v1038, %v1037
    %v1147 = vpack.c.b16 %v1040, %v1039
    %v1148 = vpack.c.b16 %v1042, %v1041
    %v1149 = vpack.c.b16 %v1044, %v1043
    %v1150 = vpack.c.b16 %v1046, %v1045
    %v1151 = vpack.c.b16 %v1048, %v1047
    %v1152 = vpack.c.b16 %v1050, %v1049
    %v1153 = vpack.c.b16 %v1052, %v1051
    %v1154 = vpack.c.b16 %v1054, %v1053
    %v1155 = vpack.c.b16 %v1056, %v1055
    %v1156 = vpack.c.b16 %v1058, %v1057
    %v1157 = vpack.c.b16 %v1060, %v1059
    %v1158 = vpack.c.b16 %v1062, %v1061
    %v1159 = vpack.c.b16 %v1064, %v1063
    %v1160 = vpack.c.b16 %v1066, %v1065
    %v1161 = vpack.c.b16 %v1068, %v1067
    %v1162 = vpack.c.b16 %v1070, %v1069
    %v1163 = vpack.c.b16 %v1072, %v1071
    %v1164 = vpack.c.b16 %v1074, %v1073
    %v1165 = vpack.c.b16 %v1076, %v1075
    %v1166 = vpack.c.b16 %v1078, %v1077
    %v1167 = vpack.c.b16 %v1080, %v1079
    %v1168 = vpack.c.b16 %v1082, %v1081
    %v1169 = vpack.c.b16 %v1084, %v1083
    %v1170 = vpack.c.b16 %v1086, %v1085
    %v1171 = vpack.c.b16 %v1088, %v1087
    %v1172 = vpack.c.b16 %v1090, %v1089
    %v1173 = vpack.c.b16 %v1092, %v1091
    %v1174 = vpack.c.b16 %v1094, %v1093
    %v1175 = vpack.c.b16 %v1096, %v1095
    %v1176 = vpack.c.b16 %v1098, %v1097
    %v1177 = vpack.c.b16 %v1100, %v1099
    %v1178 = vpack.c.b16 %v1102, %v1101
    %v1179 = vpack.c.b16 %v1104, %v1103
    %v1180 = vpack.c.b16 %v1106, %v1105
    %v1181 = vpack.c.b16 %v1108, %v1107
    %v1182 = vpack.c.b16 %v1110, %v1109
    %v1183 = vpack.c.b16 %v1112, %v1111
    %v1184 = vpack.c.b16 %v1114, %v1113
    %v1185 = vpack.c.b16 %v1116, %v1115
    %v1186 = vpack.c.b16 %v1118, %v1117
    %v1187 = vpack.c.b16 %v1120, %v1119
    %v1188 = vpack.c.b16 %v1122, %v1121
    %v1189 = vpack.c.b16 %v1124, %v1123
    %v1190 = vpack.c.b16 %v1126, %v1125
    %1255 = vmatprep.subr.bf16.mxu0 0
    %1256 = vmatpush1.bf16.msra.mxu0 %v1127
    %1257 = vmatprep.subr.bf16.mxu0 0
    %1258 = vmatpush1.bf16.msra.mxu0 %v1128
    %1259 = vmatprep.subr.bf16.mxu0 0
    %1260 = vmatpush1.bf16.msra.mxu0 %v1129
    %1261 = vmatprep.subr.bf16.mxu0 0
    %1262 = vmatpush1.bf16.msra.mxu0 %v1130
    %1263 = vmatprep.subr.bf16.mxu0 0
    %1264 = vmatpush1.bf16.msra.mxu0 %v1131
    %1265 = vmatprep.subr.bf16.mxu0 0
    %1266 = vmatpush1.bf16.msra.mxu0 %v1132
    %1267 = vmatprep.subr.bf16.mxu0 0
    %1268 = vmatpush1.bf16.msra.mxu0 %v1133
    %1269 = vmatprep.subr.bf16.mxu0 0
    %1270 = vmatpush1.bf16.msra.mxu0 %v1134
    %1271 = vmatprep.subr.bf16.mxu0 0
    %1272 = vmatpush1.bf16.msra.mxu0 %v1135
    %1273 = vmatprep.subr.bf16.mxu0 0
    %1274 = vmatpush1.bf16.msra.mxu0 %v1136
    %1275 = vmatprep.subr.bf16.mxu0 0
    %1276 = vmatpush1.bf16.msra.mxu0 %v1137
    %1277 = vmatprep.subr.bf16.mxu0 0
    %1278 = vmatpush1.bf16.msra.mxu0 %v1138
    %1279 = vmatprep.subr.bf16.mxu0 0
    %1280 = vmatpush1.bf16.msra.mxu0 %v1139
    %1281 = vmatprep.subr.bf16.mxu0 0
    %1282 = vmatpush1.bf16.msra.mxu0 %v1140
    %1283 = vmatprep.subr.bf16.mxu0 0
    %1284 = vmatpush1.bf16.msra.mxu0 %v1141
    %1285 = vmatprep.subr.bf16.mxu0 0
    %1286 = vmatpush1.bf16.msra.mxu0 %v1142
    %1287 = vmatprep.mubr.bf16.mxu0 %v736
    %1288 = vmatmul.mubr.bf16.gmra.mrb[0].mxu0 %v735
    %v1289 = vpop.f32.mrb[0].mxu0
    %v1290 = vadd.f32 0.0, %v1289
    %v1291 = vpop.f32.mrb[0].mxu0
    %v1292 = vpop.f32.mrb[0].mxu0
    %v1293 = vpop.f32.mrb[0].mxu0
    %1294 = vdwg.mxu0
    %1295 = vmatprep.subr.bf16.mxu0 0
    %1296 = vmatpush1.bf16.msra.mxu0 %v1143
    %1297 = vmatprep.subr.bf16.mxu0 0
    %1298 = vmatpush1.bf16.msra.mxu0 %v1144
    %1299 = vmatprep.subr.bf16.mxu0 0
    %1300 = vmatpush1.bf16.msra.mxu0 %v1145
    %1301 = vmatprep.subr.bf16.mxu0 0
    %1302 = vmatpush1.bf16.msra.mxu0 %v1146
    %1303 = vmatprep.subr.bf16.mxu0 0
    %1304 = vmatpush1.bf16.msra.mxu0 %v1147
    %1305 = vmatprep.subr.bf16.mxu0 0
    %1306 = vmatpush1.bf16.msra.mxu0 %v1148
    %1307 = vmatprep.subr.bf16.mxu0 0
    %1308 = vmatpush1.bf16.msra.mxu0 %v1149
    %1309 = vmatprep.subr.bf16.mxu0 0
    %1310 = vmatpush1.bf16.msra.mxu0 %v1150
    %1311 = vmatprep.subr.bf16.mxu0 0
    %1312 = vmatpush1.bf16.msra.mxu0 %v1151
    %1313 = vmatprep.subr.bf16.mxu0 0
    %1314 = vmatpush1.bf16.msra.mxu0 %v1152
    %1315 = vmatprep.subr.bf16.mxu0 0
    %1316 = vmatpush1.bf16.msra.mxu0 %v1153
    %1317 = vmatprep.subr.bf16.mxu0 0
    %1318 = vmatpush1.bf16.msra.mxu0 %v1154
    %1319 = vmatprep.subr.bf16.mxu0 0
    %1320 = vmatpush1.bf16.msra.mxu0 %v1155
    %1321 = vmatprep.subr.bf16.mxu0 0
    %1322 = vmatpush1.bf16.msra.mxu0 %v1156
    %1323 = vmatprep.subr.bf16.mxu0 0
    %1324 = vmatpush1.bf16.msra.mxu0 %v1157
    %1325 = vmatprep.subr.bf16.mxu0 0
    %1326 = vmatpush1.bf16.msra.mxu0 %v1158
    %1327 = vmatprep.mubr.bf16.mxu0 %v738
    %1328 = vmatmul.mubr.bf16.gmra.mrb[0].mxu0 %v737
    %v1329 = vpop.f32.mrb[0].mxu0
    %v1330 = vadd.f32 %v1290, %v1329
    %v1331 = vpop.f32.mrb[0].mxu0
    %v1332 = vpop.f32.mrb[0].mxu0
    %v1333 = vpop.f32.mrb[0].mxu0
    %1334 = vdwg.mxu0
    %1335 = vmatprep.subr.bf16.mxu0 0
    %1336 = vmatpush1.bf16.msra.mxu0 %v1159
    %1337 = vmatprep.subr.bf16.mxu0 0
    %1338 = vmatpush1.bf16.msra.mxu0 %v1160
    %1339 = vmatprep.subr.bf16.mxu0 0
    %1340 = vmatpush1.bf16.msra.mxu0 %v1161
    %1341 = vmatprep.subr.bf16.mxu0 0
    %1342 = vmatpush1.bf16.msra.mxu0 %v1162
    %1343 = vmatprep.subr.bf16.mxu0 0
    %1344 = vmatpush1.bf16.msra.mxu0 %v1163
    %1345 = vmatprep.subr.bf16.mxu0 0
    %1346 = vmatpush1.bf16.msra.mxu0 %v1164
    %1347 = vmatprep.subr.bf16.mxu0 0
    %1348 = vmatpush1.bf16.msra.mxu0 %v1165
    %1349 = vmatprep.subr.bf16.mxu0 0
    %1350 = vmatpush1.bf16.msra.mxu0 %v1166
    %1351 = vmatprep.subr.bf16.mxu0 0
    %1352 = vmatpush1.bf16.msra.mxu0 %v1167
    %1353 = vmatprep.subr.bf16.mxu0 0
    %1354 = vmatpush1.bf16.msra.mxu0 %v1168
    %1355 = vmatprep.subr.bf16.mxu0 0
    %1356 = vmatpush1.bf16.msra.mxu0 %v1169
    %1357 = vmatprep.subr.bf16.mxu0 0
    %1358 = vmatpush1.bf16.msra.mxu0 %v1170
    %1359 = vmatprep.subr.bf16.mxu0 0
    %1360 = vmatpush1.bf16.msra.mxu0 %v1171
    %1361 = vmatprep.subr.bf16.mxu0 0
    %1362 = vmatpush1.bf16.msra.mxu0 %v1172
    %1363 = vmatprep.subr.bf16.mxu0 0
    %1364 = vmatpush1.bf16.msra.mxu0 %v1173
    %1365 = vmatprep.subr.bf16.mxu0 0
    %1366 = vmatpush1.bf16.msra.mxu0 %v1174
    %1367 = vmatprep.mubr.bf16.mxu0 %v740
    %1368 = vmatmul.mubr.bf16.gmra.mrb[0].mxu0 %v739
    %v1369 = vpop.f32.mrb[0].mxu0
    %v1370 = vadd.f32 %v1330, %v1369
    %v1371 = vpop.f32.mrb[0].mxu0
    %v1372 = vpop.f32.mrb[0].mxu0
    %v1373 = vpop.f32.mrb[0].mxu0
    %1374 = vdwg.mxu0
    %1375 = vmatprep.subr.bf16.mxu0 0
    %1376 = vmatpush1.bf16.msra.mxu0 %v1175
    %1377 = vmatprep.subr.bf16.mxu0 0
    %1378 = vmatpush1.bf16.msra.mxu0 %v1176
    %1379 = vmatprep.subr.bf16.mxu0 0
    %1380 = vmatpush1.bf16.msra.mxu0 %v1177
    %1381 = vmatprep.subr.bf16.mxu0 0
    %1382 = vmatpush1.bf16.msra.mxu0 %v1178
    %1383 = vmatprep.subr.bf16.mxu0 0
    %1384 = vmatpush1.bf16.msra.mxu0 %v1179
    %1385 = vmatprep.subr.bf16.mxu0 0
    %1386 = vmatpush1.bf16.msra.mxu0 %v1180
    %1387 = vmatprep.subr.bf16.mxu0 0
    %1388 = vmatpush1.bf16.msra.mxu0 %v1181
    %1389 = vmatprep.subr.bf16.mxu0 0
    %1390 = vmatpush1.bf16.msra.mxu0 %v1182
    %1391 = vmatprep.subr.bf16.mxu0 0
    %1392 = vmatpush1.bf16.msra.mxu0 %v1183
    %1393 = vmatprep.subr.bf16.mxu0 0
    %1394 = vmatpush1.bf16.msra.mxu0 %v1184
    %1395 = vmatprep.subr.bf16.mxu0 0
    %1396 = vmatpush1.bf16.msra.mxu0 %v1185
    %1397 = vmatprep.subr.bf16.mxu0 0
    %1398 = vmatpush1.bf16.msra.mxu0 %v1186
    %1399 = vmatprep.subr.bf16.mxu0 0
    %1400 = vmatpush1.bf16.msra.mxu0 %v1187
    %1401 = vmatprep.subr.bf16.mxu0 0
    %1402 = vmatpush1.bf16.msra.mxu0 %v1188
    %1403 = vmatprep.subr.bf16.mxu0 0
    %1404 = vmatpush1.bf16.msra.mxu0 %v1189
    %1405 = vmatprep.subr.bf16.mxu0 0
    %1406 = vmatpush1.bf16.msra.mxu0 %v1190
    %1407 = vmatprep.mubr.bf16.mxu0 %v742
    %1408 = vmatmul.mubr.bf16.gmra.mrb[0].mxu0 %v741
    %v1409 = vpop.f32.mrb[0].mxu0
    %v1410 = vadd.f32 %v1370, %v1409
    %v1411 = vpop.f32.mrb[0].mxu0
    %v1412 = vpop.f32.mrb[0].mxu0
    %v1413 = vpop.f32.mrb[0].mxu0
    %1414 = vdwg.mxu0
    %v1415 = vmax.f32 %v1410, 0.0
    %v1416 = vpack.c.bf16 %v1415, %v1415
    %v1417 = vld [vmem:[#allocation8] sm:$0xf]
    %v1418 = vld [vmem:[#allocation8 + $0x4] sm:$0xf]
    %v1419 = vld [vmem:[#allocation8 + $0x8] sm:$0xf]
    %v1420 = vld [vmem:[#allocation8 + $0xc] sm:$0xf]
    %v1421 = vld [vmem:[#allocation8 + $0x10] sm:$0xf]
    %v1422 = vld [vmem:[#allocation8 + $0x14] sm:$0xf]
    %v1423 = vld [vmem:[#allocation8 + $0x18] sm:$0xf]
    %v1424 = vld [vmem:[#allocation8 + $0x1c] sm:$0xf]
    %v1425 = vld [vmem:[#allocation8 + $0x20] sm:$0xf]
    %v1426 = vld [vmem:[#allocation8 + $0x24] sm:$0xf]
    %v1427 = vld [vmem:[#allocation8 + $0x28] sm:$0xf]
    %v1428 = vld [vmem:[#allocation8 + $0x2c] sm:$0xf]
    %v1429 = vld [vmem:[#allocation8 + $0x30] sm:$0xf]
    %v1430 = vld [vmem:[#allocation8 + $0x34] sm:$0xf]
    %v1431 = vld [vmem:[#allocation8 + $0x38] sm:$0xf]
    %v1432 = vld [vmem:[#allocation8 + $0x3c] sm:$0xf]
    %v1449 = vunpack.c.l.b16 %v1417
    %v1450 = vunpack.c.l.b16 %v1418
    %v1451 = vunpack.c.l.b16 %v1419
    %v1452 = vunpack.c.l.b16 %v1420
    %v1453 = vunpack.c.l.b16 %v1421
    %v1454 = vunpack.c.l.b16 %v1422
    %v1455 = vunpack.c.l.b16 %v1423
    %v1456 = vunpack.c.l.b16 %v1424
    %v1457 = vunpack.c.l.b16 %v1425
    %v1458 = vunpack.c.l.b16 %v1426
    %v1459 = vunpack.c.l.b16 %v1427
    %v1460 = vunpack.c.l.b16 %v1428
    %v1461 = vunpack.c.l.b16 %v1429
    %v1462 = vunpack.c.l.b16 %v1430
    %v1463 = vunpack.c.l.b16 %v1431
    %v1464 = vunpack.c.l.b16 %v1432
    %v1465 = vpack.c.b16 %v1450, %v1449
    %v1466 = vpack.c.b16 %v1452, %v1451
    %v1467 = vpack.c.b16 %v1454, %v1453
    %v1468 = vpack.c.b16 %v1456, %v1455
    %v1469 = vpack.c.b16 %v1458, %v1457
    %v1470 = vpack.c.b16 %v1460, %v1459
    %v1471 = vpack.c.b16 %v1462, %v1461
    %v1472 = vpack.c.b16 %v1464, %v1463
    %1481 = vmatprep.subr.bf16.mxu0 0
    %1482 = vmatpush1.bf16.msra.mxu0 %v1465
    %1483 = vmatprep.subr.bf16.mxu0 0
    %1484 = vmatpush1.bf16.msra.mxu0 %v1466
    %1485 = vmatprep.subr.bf16.mxu0 0
    %1486 = vmatpush1.bf16.msra.mxu0 %v1467
    %1487 = vmatprep.subr.bf16.mxu0 0
    %1488 = vmatpush1.bf16.msra.mxu0 %v1468
    %1489 = vmatprep.subr.bf16.mxu0 0
    %1490 = vmatpush1.bf16.msra.mxu0 %v1469
    %1491 = vmatprep.subr.bf16.mxu0 0
    %1492 = vmatpush1.bf16.msra.mxu0 %v1470
    %1493 = vmatprep.subr.bf16.mxu0 0
    %1494 = vmatpush1.bf16.msra.mxu0 %v1471
    %1495 = vmatprep.subr.bf16.mxu0 0
    %1496 = vmatpush1.bf16.msra.mxu0 %v1472
    %1497 = vmatprep.subr.bf16.mxu0 0
    %1498 = vmatpush1.bf16.msra.mxu0 0
    %1499 = vmatprep.subr.bf16.mxu0 0
    %1500 = vmatpush1.bf16.msra.mxu0 0
    %1501 = vmatprep.subr.bf16.mxu0 0
    %1502 = vmatpush1.bf16.msra.mxu0 0
    %1503 = vmatprep.subr.bf16.mxu0 0
    %1504 = vmatpush1.bf16.msra.mxu0 0
    %1505 = vmatprep.subr.bf16.mxu0 0
    %1506 = vmatpush1.bf16.msra.mxu0 0
    %1507 = vmatprep.subr.bf16.mxu0 0
    %1508 = vmatpush1.bf16.msra.mxu0 0
    %1509 = vmatprep.subr.bf16.mxu0 0
    %1510 = vmatpush1.bf16.msra.mxu0 0
    %1511 = vmatprep.subr.bf16.mxu0 0
    %1512 = vmatpush1.bf16.msra.mxu0 0
    %1513 = vmatprep.mubr.bf16.mxu0 0
    %1514 = vmatmul.mubr.bf16.gmra.mrb[0].mxu0 %v1416
    %v1515 = vpop.f32.mrb[0].mxu0
    %v1516 = vadd.f32 0.0, %v1515
    %v1517 = vpop.f32.mrb[0].mxu0
    %v1518 = vpop.f32.mrb[0].mxu0
    %v1519 = vpop.f32.mrb[0].mxu0
    %1520 = vdwg.mxu0
    %1521 = vst [vmem:[#allocation10] sm:$0xff] %v1516
    // Predicated region
    $region34: #{tpu_custom_call.1} parent=1 // pred_check
      _
    $region35: #{tpu_custom_call.1} parent=1 // pred_check_branch
      %1523 = sbr.rel (0) target = $region37
    $region36: #{tpu_custom_call.1} parent=1 // pred_region
      %s1525 = ssub.s32 128, 128
      %1526 = vsyncadd [#allocation4], %s1525
      %s1528 = sshll.u32 [#allocation10], 4
      %s1529 = int_to_ptr.vmem [resolvable:$true] %s1528
      %1531 = dma.vmem_to_hbm [thread:$0]  %s1529, 128, %s4, [#allocation4]
    $region37: #{tpu_custom_call.1} parent=1 // pred_fallthru
      _
    // Predicated region
    $region38: #{tpu_custom_call.1} parent=1 // pred_check
      _
    $region39: #{tpu_custom_call.1} parent=1 // pred_check_branch
      %1533 = sbr.rel (0) target = $region41
    $region40: #{tpu_custom_call.1} parent=1 // pred_region
      %1534 = dma.done [#allocation4], 128
    $region41: #{tpu_custom_call.1} parent=1 // pred_fallthru
      _
    %1535 = vsyncpa [#allocation3], 1
    %1536 = vsyncpa [#allocation6], 1
    %1537 = vsyncpa [#allocation9], 1
    %1538 = vsyncpa [#allocation4], 1

</llo_original>
